<compile_context>
chip_gen: v7x
topology: tpu7x:2x2x1
jax: 0.10.0
libtpu: 0.0.40
codegen_flags: <defaults>
</compile_context>

<pallas_src>
import functools
import jax
import jax.numpy as jnp
from jax import lax
from jax.experimental import pallas as pl
from jax.experimental.pallas import tpu as pltpu


def _downsample_kernel(p_ref, w_ref, g_ref, b_ref, o_ref, sum_ref, ssq_ref,
                       *, true_ohw):
    # p_ref : (1, CKK, T)      bf16 im2col patch tile (spatial on lanes)
    # w_ref : (OC, CKK)        bf16 conv weight (constant block -> no re-DMA)
    # g_ref : (OC, 1)          f32 instance-norm gamma
    # b_ref : (OC, 1)          f32 instance-norm beta
    # o_ref : (1, OC, OHW_pad) f32 output, VMEM-resident across the spatial axis
    # sum_ref / ssq_ref : (OC, 1) f32 running per-channel sum / sum-of-squares
    j = pl.program_id(1)
    n_tiles = pl.num_programs(1)
    tile = p_ref.shape[-1]

    @pl.when(j == 0)
    def _init():
        sum_ref[...] = jnp.zeros_like(sum_ref)
        ssq_ref[...] = jnp.zeros_like(ssq_ref)

    # Convolution hot path: (OC, CKK) @ (CKK, T) on the MXU, f32 accumulate.
    conv = jnp.dot(w_ref[...], p_ref[0], preferred_element_type=jnp.float32)

    # Single-pass instance-norm statistics, accumulated across spatial tiles.
    # Padded (all-zero) columns contribute exactly 0 to both accumulators.
    sum_ref[...] += jnp.sum(conv, axis=1, keepdims=True)
    ssq_ref[...] += jnp.sum(conv * conv, axis=1, keepdims=True)

    # Stash the pre-norm conv tile into the resident, lane-dense output block.
    start = pl.multiple_of(j * tile, tile)
    o_ref[0, :, pl.ds(start, tile)] = conv.astype(o_ref.dtype)

    # Finalize after the last spatial tile: normalize + affine + LeakyReLU(0.2).
    @pl.when(j == n_tiles - 1)
    def _finalize():
        inv_n = 1.0 / true_ohw                                     # real count
        mean = sum_ref[...] * inv_n                                # (OC, 1)
        var = jnp.maximum(ssq_ref[...] * inv_n - mean * mean, 0.0)
        scale = g_ref[...] * lax.rsqrt(var + 1e-5)                 # (OC, 1)
        shift = b_ref[...] - mean * scale                          # (OC, 1)
        y = o_ref[0] * scale + shift                               # (OC, OHW_pad)
        o_ref[0] = jnp.where(y >= 0, y, 0.2 * y).astype(o_ref.dtype)


def _im2col_cm(x, k, stride, pad):
    # x: (N, C, H, W) -> (N, C*K*K, OH*OW), element ordering c*K*K + kh*K + kw.
    # Channel-major rows; spatial stays the lane axis (no trailing transpose).
    # TODO(synk): fuse the strided patch extraction into the kernel (no clean
    # BlockSpec expression for the stride-2 gather); XLA materializes it here.
    n, c, h, w = x.shape
    oh = (h + 2 * pad - k) // stride + 1
    ow = (w + 2 * pad - k) // stride + 1
    xp = jnp.pad(x, ((0, 0), (0, 0), (pad, pad), (pad, pad)))
    cols = []
    for kh in range(k):
        for kw in range(k):
            cols.append(xp[:, :, kh:kh + stride * oh:stride,
                           kw:kw + stride * ow:stride])            # (N, C, OH, OW)
    patches = jnp.stack(cols, axis=2)                              # (N, C, K*K, OH, OW)
    return patches.reshape(n, c * k * k, oh * ow), oh, ow


def _pick_spatial_tile(ohw_pad, ckk, oc):
    # Largest 128-multiple tile (256/512 feed the v6e/v7x 256-wide MXU better)
    # whose double-buffered patch tiles + weight + resident output fit budget.
    budget = 40 << 20
    fixed = 2 * oc * ckk * 2 + 2 * oc * ohw_pad * 4
    for t in (512, 256, 128):
        if ohw_pad % t == 0 and (fixed + 2 * ckk * t * 2 <= budget or t == 128):
            return t
    return 128  # unreachable: ohw_pad is always a multiple of 128


@functools.partial(jax.jit, static_argnames=("kernel_size", "stride", "padding"))
def downsampling_forward(x, weight, gamma, beta, kernel_size=4, stride=2, padding=1):
    """x: (N, C, H, W) NCHW. weight: (OC, C, K, K). gamma/beta: (OC,)."""
    n, c, h, w = x.shape
    oc = weight.shape[0]
    k = kernel_size

    # bf16 MXU operands (halves im2col HBM traffic); accumulation stays f32.
    patches, oh, ow = _im2col_cm(x.astype(jnp.bfloat16), k, stride, padding)
    ohw = oh * ow
    ckk = c * k * k

    # Pad the spatial (lane) axis to a multiple of 128: unmasked lane-dense
    # stores and aligned tiling for any image size.
    ohw_pad = ((ohw + 127) // 128) * 128
    if ohw_pad != ohw:
        patches = jnp.pad(patches, ((0, 0), (0, 0), (0, ohw_pad - ohw)))

    tile = _pick_spatial_tile(ohw_pad, ckk, oc)
    n_tiles = ohw_pad // tile

    w_mat = weight.reshape(oc, ckk).astype(jnp.bfloat16)           # (OC, CKK)
    g = gamma.reshape(oc, 1).astype(jnp.float32)
    b = beta.reshape(oc, 1).astype(jnp.float32)

    # VMEM budget: double-buffered bf16 patch tiles + bf16 weight + (possibly
    # double-buffered) resident f32 output block + tiny scratches.  Clamp so
    # the limit stays safe on v7x (64 MiB physical VMEM).
    est = (2 * ckk * tile * 2 + 2 * oc * ckk * 2 + 2 * oc * ohw_pad * 4
           + 8 * oc * 4 + (2 << 20))
    vmem_limit = int(min(max(est, 32 << 20), 56 << 20))

    out = pl.pallas_call(
        functools.partial(_downsample_kernel, true_ohw=ohw),
        out_shape=jax.ShapeDtypeStruct((n, oc, ohw_pad), jnp.float32),
        grid_spec=pltpu.PrefetchScalarGridSpec(
            num_scalar_prefetch=0,
            grid=(n, n_tiles),
            in_specs=[
                pl.BlockSpec((1, ckk, tile), lambda i, j: (i, 0, j)),
                pl.BlockSpec((oc, ckk), lambda i, j: (0, 0)),
                pl.BlockSpec((oc, 1), lambda i, j: (0, 0)),
                pl.BlockSpec((oc, 1), lambda i, j: (0, 0)),
            ],
            out_specs=pl.BlockSpec((1, oc, ohw_pad), lambda i, j: (i, 0, 0)),
            scratch_shapes=[pltpu.VMEM((oc, 1), jnp.float32),
                            pltpu.VMEM((oc, 1), jnp.float32)],
        ),
        compiler_params=pltpu.CompilerParams(
            dimension_semantics=("parallel", "arbitrary"),
            vmem_limit_bytes=vmem_limit),
    )(patches, w_mat, g, b)

    if ohw_pad != ohw:
        out = out[:, :, :ohw]
    # (N, OC, OHW) -> (N, OC, OH, OW): pure reshape, no HBM transpose.
    return out.reshape(n, oc, oh, ow)


def _reference_forward(x, weight, gamma, beta, stride=2, padding=1):
    # Pure-JAX reference.  Inputs quantized to bf16 to mirror the kernel's MXU
    # operand precision; accumulation and norm math are f32 in both.
    xq = x.astype(jnp.bfloat16).astype(jnp.float32)
    wq = weight.astype(jnp.bfloat16).astype(jnp.float32)
    conv = lax.conv_general_dilated(
        xq, wq, window_strides=(stride, stride),
        padding=((padding, padding), (padding, padding)),
        dimension_numbers=("NCHW", "OIHW", "NCHW"))
    mean = jnp.mean(conv, axis=(2, 3), keepdims=True)
    var = jnp.mean((conv - mean) ** 2, axis=(2, 3), keepdims=True)
    xhat = (conv - mean) * lax.rsqrt(var + 1e-5)
    y = xhat * gamma.reshape(1, -1, 1, 1) + beta.reshape(1, -1, 1, 1)
    return jnp.where(y >= 0, y, 0.2 * y)


if __name__ == "__main__":
    key = jax.random.PRNGKey(0)
    k_x, k_w, k_g, k_b = jax.random.split(key, 4)

    N, C_IN, C_OUT, H, W, K = 2, 4, 8, 16, 16, 4

    x = jax.random.normal(k_x, (N, C_IN, H, W), dtype=jnp.float32)
    # Conv2d weight (OC, IC, KH, KW); bias=False because norm=True.
    fan_in = C_IN * K * K
    bound = 1.0 / (fan_in ** 0.5)
    weight = jax.random.uniform(k_w, (C_OUT, C_IN, K, K),
                                minval=-bound, maxval=bound, dtype=jnp.float32)
    # InstanceNorm2d(affine=True) params (synthetic deterministic init).
    gamma = 1.0 + 0.1 * jax.random.normal(k_g, (C_OUT,), dtype=jnp.float32)
    beta = 0.1 * jax.random.normal(k_b, (C_OUT,), dtype=jnp.float32)

    out = jax.block_until_ready(downsampling_forward(x, weight, gamma, beta))
    ref = jax.block_until_ready(_reference_forward(x, weight, gamma, beta))

    assert out.shape == (N, C_OUT, H // 2, W // 2)
    assert jnp.allclose(out, ref, atol=2e-3, rtol=2e-3), "mismatch vs reference"

    print("KERNEL_OK")
</pallas_src>

<mosaic_0001>
module attributes {stable_mosaic.version = 11 : i64} {
  func.func @_downsample_kernel(%arg0: i32, %arg1: i32, %arg2: memref<1x64x128xbf16, #tpu.memory_space<vmem>>, %arg3: memref<8x64xbf16, #tpu.memory_space<vmem>>, %arg4: memref<8x1xf32, #tpu.memory_space<vmem>>, %arg5: memref<8x1xf32, #tpu.memory_space<vmem>>, %arg6: memref<1x8x128xf32, #tpu.memory_space<vmem>>, %arg7: memref<8x1xf32, #tpu.memory_space<vmem>>, %arg8: memref<8x1xf32, #tpu.memory_space<vmem>>) attributes {dimension_semantics = [#tpu.dimension_semantics<parallel>, #tpu.dimension_semantics<arbitrary>], iteration_bounds = array<i64: 2, 1>, scalar_prefetch = 0 : i64, scratch_operands = 2 : i64, tpu.core_type = #tpu.core_type<tc>, window_params = [{transform_indices = @transform_0, window_bounds = array<i64: 1, 64, 128>}, {pipeline_mode = #tpu.pipeline_mode<synchronous>, transform_indices = @transform_1, window_bounds = array<i64: 8, 64>}, {pipeline_mode = #tpu.pipeline_mode<synchronous>, transform_indices = @transform_2, window_bounds = array<i64: 8, 1>}, {pipeline_mode = #tpu.pipeline_mode<synchronous>, transform_indices = @transform_3, window_bounds = array<i64: 8, 1>}, {transform_indices = @transform_4, window_bounds = array<i64: 1, 8, 128>}]} {
    %c0_i32 = arith.constant 0 : i32
    %0 = arith.cmpi eq, %arg1, %c0_i32 : i32
    %1 = arith.extui %0 : i1 to i32
    %c0_i32_0 = arith.constant 0 : i32
    %2 = arith.cmpi ne, %1, %c0_i32_0 : i32
    scf.if %2 {
      %cst_19 = arith.constant 0.000000e+00 : f32
      %27 = vector.broadcast %cst_19 : f32 to vector<8x1xf32>
      %c0_20 = arith.constant 0 : index
      %c0_21 = arith.constant 0 : index
      %28 = vector.load %arg7[%c0_20, %c0_21] : memref<8x1xf32, #tpu.memory_space<vmem>>, vector<8x1xf32>
      tpu.vector_store %arg7[%c0_20, %c0_21], %27 {strides = array<i32>} : memref<8x1xf32, #tpu.memory_space<vmem>>, vector<8x1xf32>,
      %cst_22 = arith.constant 0.000000e+00 : f32
      %29 = vector.broadcast %cst_22 : f32 to vector<8x1xf32>
      %c0_23 = arith.constant 0 : index
      %c0_24 = arith.constant 0 : index
      %30 = vector.load %arg8[%c0_23, %c0_24] : memref<8x1xf32, #tpu.memory_space<vmem>>, vector<8x1xf32>
      tpu.vector_store %arg8[%c0_23, %c0_24], %29 {strides = array<i32>} : memref<8x1xf32, #tpu.memory_space<vmem>>, vector<8x1xf32>,
    } else {
    }
    %c0 = arith.constant 0 : index
    %c0_1 = arith.constant 0 : index
    %3 = vector.load %arg3[%c0, %c0_1] : memref<8x64xbf16, #tpu.memory_space<vmem>>, vector<8x64xbf16>
    %c0_2 = arith.constant 0 : index
    %c0_3 = arith.constant 0 : index
    %c0_4 = arith.constant 0 : index
    %4 = vector.load %arg2[%c0_2, %c0_3, %c0_4] : memref<1x64x128xbf16, #tpu.memory_space<vmem>>, vector<1x64x128xbf16>
    %5 = vector.shape_cast %4 : vector<1x64x128xbf16> to vector<64x128xbf16>
    %cst = arith.constant dense<0.000000e+00> : vector<8x128xf32>
    %6 = tpu.matmul %3, %5, %cst {dimension_numbers = #tpu.dot_dimension_numbers<[1], [0], [0], [1], [0, 0, 1, 1], [], []>} : vector<8x64xbf16>, vector<64x128xbf16>, vector<8x128xf32> -> vector<8x128xf32>
    %c0_5 = arith.constant 0 : index
    %c0_6 = arith.constant 0 : index
    %7 = vector.load %arg7[%c0_5, %c0_6] : memref<8x1xf32, #tpu.memory_space<vmem>>, vector<8x1xf32>
    %cst_7 = arith.constant dense<0.000000e+00> : vector<8xf32>
    %8 = vector.multi_reduction <add>, %6, %cst_7 [1] : vector<8x128xf32> to vector<8xf32>
    %9 = vector.shape_cast %8 : vector<8xf32> to vector<8x1xf32>
    %10 = arith.addf %7, %9 : vector<8x1xf32>
    %c0_8 = arith.constant 0 : index
    %c0_9 = arith.constant 0 : index
    %11 = vector.load %arg7[%c0_8, %c0_9] : memref<8x1xf32, #tpu.memory_space<vmem>>, vector<8x1xf32>
    tpu.vector_store %arg7[%c0_8, %c0_9], %10 {strides = array<i32>} : memref<8x1xf32, #tpu.memory_space<vmem>>, vector<8x1xf32>,
    %c0_10 = arith.constant 0 : index
    %c0_11 = arith.constant 0 : index
    %12 = vector.load %arg8[%c0_10, %c0_11] : memref<8x1xf32, #tpu.memory_space<vmem>>, vector<8x1xf32>
    %13 = arith.mulf %6, %6 : vector<8x128xf32>
    %cst_12 = arith.constant dense<0.000000e+00> : vector<8xf32>
    %14 = vector.multi_reduction <add>, %13, %cst_12 [1] : vector<8x128xf32> to vector<8xf32>
    %15 = vector.shape_cast %14 : vector<8xf32> to vector<8x1xf32>
    %16 = arith.addf %12, %15 : vector<8x1xf32>
    %c0_13 = arith.constant 0 : index
    %c0_14 = arith.constant 0 : index
    %17 = vector.load %arg8[%c0_13, %c0_14] : memref<8x1xf32, #tpu.memory_space<vmem>>, vector<8x1xf32>
    tpu.vector_store %arg8[%c0_13, %c0_14], %16 {strides = array<i32>} : memref<8x1xf32, #tpu.memory_space<vmem>>, vector<8x1xf32>,
    %c128_i32 = arith.constant 128 : i32
    %18 = arith.muli %arg1, %c128_i32 : i32
    %19 = tpu.assume_multiple %18, 128 : i32
    %c0_15 = arith.constant 0 : index
    %c0_16 = arith.constant 0 : index
    %20 = arith.index_cast %19 : i32 to index
    %21 = vector.load %arg6[%c0_15, %c0_16, %20] : memref<1x8x128xf32, #tpu.memory_space<vmem>>, vector<1x8x128xf32>
    %22 = vector.shape_cast %21 : vector<1x8x128xf32> to vector<8x128xf32>
    %23 = vector.shape_cast %6 : vector<8x128xf32> to vector<1x8x128xf32>
    tpu.vector_store %arg6[%c0_15, %c0_16, %20], %23 {strides = array<i32>} : memref<1x8x128xf32, #tpu.memory_space<vmem>>, vector<1x8x128xf32>,
    %c0_i32_17 = arith.constant 0 : i32
    %24 = arith.cmpi eq, %arg1, %c0_i32_17 : i32
    %25 = arith.extui %24 : i1 to i32
    %c0_i32_18 = arith.constant 0 : i32
    %26 = arith.cmpi ne, %25, %c0_i32_18 : i32
    scf.if %26 {
      %c0_19 = arith.constant 0 : index
      %c0_20 = arith.constant 0 : index
      %27 = vector.load %arg7[%c0_19, %c0_20] : memref<8x1xf32, #tpu.memory_space<vmem>>, vector<8x1xf32>
      %cst_21 = arith.constant 1.562500e-02 : f32
      %28 = vector.broadcast %cst_21 : f32 to vector<8x1xf32>
      %29 = arith.mulf %27, %28 : vector<8x1xf32>
      %c0_22 = arith.constant 0 : index
      %c0_23 = arith.constant 0 : index
      %30 = vector.load %arg8[%c0_22, %c0_23] : memref<8x1xf32, #tpu.memory_space<vmem>>, vector<8x1xf32>
      %cst_24 = arith.constant 1.562500e-02 : f32
      %31 = vector.broadcast %cst_24 : f32 to vector<8x1xf32>
      %32 = arith.mulf %30, %31 : vector<8x1xf32>
      %33 = arith.mulf %29, %29 : vector<8x1xf32>
      %34 = arith.subf %32, %33 : vector<8x1xf32>
      %cst_25 = arith.constant 0.000000e+00 : f32
      %35 = vector.broadcast %cst_25 : f32 to vector<8x1xf32>
      %36 = arith.maximumf %34, %35 : vector<8x1xf32>
      %c0_26 = arith.constant 0 : index
      %c0_27 = arith.constant 0 : index
      %37 = vector.load %arg4[%c0_26, %c0_27] : memref<8x1xf32, #tpu.memory_space<vmem>>, vector<8x1xf32>
      %cst_28 = arith.constant 9.99999974E-6 : f32
      %38 = vector.broadcast %cst_28 : f32 to vector<8x1xf32>
      %39 = arith.addf %36, %38 : vector<8x1xf32>
      %40 = math.rsqrt %39 : vector<8x1xf32>
      %41 = arith.mulf %37, %40 : vector<8x1xf32>
      %c0_29 = arith.constant 0 : index
      %c0_30 = arith.constant 0 : index
      %42 = vector.load %arg5[%c0_29, %c0_30] : memref<8x1xf32, #tpu.memory_space<vmem>>, vector<8x1xf32>
      %43 = arith.mulf %29, %41 : vector<8x1xf32>
      %44 = arith.subf %42, %43 : vector<8x1xf32>
      %c0_31 = arith.constant 0 : index
      %c0_32 = arith.constant 0 : index
      %c0_33 = arith.constant 0 : index
      %45 = vector.load %arg6[%c0_31, %c0_32, %c0_33] : memref<1x8x128xf32, #tpu.memory_space<vmem>>, vector<1x8x128xf32>
      %46 = vector.shape_cast %45 : vector<1x8x128xf32> to vector<8x128xf32>
      %47 = vector.broadcast %41 : vector<8x1xf32> to vector<8x128xf32>
      %48 = arith.mulf %46, %47 : vector<8x128xf32>
      %49 = vector.broadcast %44 : vector<8x1xf32> to vector<8x128xf32>
      %50 = arith.addf %48, %49 : vector<8x128xf32>
      %cst_34 = arith.constant 0.000000e+00 : f32
      %51 = vector.broadcast %cst_34 : f32 to vector<8x128xf32>
      %52 = arith.cmpf oge, %50, %51 : vector<8x128xf32>
      %cst_35 = arith.constant 2.000000e-01 : f32
      %53 = vector.broadcast %cst_35 : f32 to vector<8x128xf32>
      %54 = arith.mulf %53, %50 : vector<8x128xf32>
      %55 = arith.select %52, %50, %54 : vector<8x128xi1>, vector<8x128xf32>
      %c0_36 = arith.constant 0 : index
      %c0_37 = arith.constant 0 : index
      %c0_38 = arith.constant 0 : index
      %56 = vector.load %arg6[%c0_36, %c0_37, %c0_38] : memref<1x8x128xf32, #tpu.memory_space<vmem>>, vector<1x8x128xf32>
      %57 = vector.shape_cast %56 : vector<1x8x128xf32> to vector<8x128xf32>
      %58 = vector.shape_cast %55 : vector<8x128xf32> to vector<1x8x128xf32>
      tpu.vector_store %arg6[%c0_36, %c0_37, %c0_38], %58 {strides = array<i32>} : memref<1x8x128xf32, #tpu.memory_space<vmem>>, vector<1x8x128xf32>,
    } else {
    }
    return
  }
  func.func @transform_0(%arg0: i32, %arg1: i32) -> (i32, i32, i32) {
    %c0_i32 = arith.constant 0 : i32
    %c0_i32_0 = arith.constant 0 : i32
    return %arg0, %c0_i32, %arg1 : i32, i32, i32
  }
  func.func @transform_1(%arg0: i32, %arg1: i32) -> (i32, i32) {
    %c0_i32 = arith.constant 0 : i32
    %c0_i32_0 = arith.constant 0 : i32
    %c0_i32_1 = arith.constant 0 : i32
    return %c0_i32, %c0_i32_0 : i32, i32
  }
  func.func @transform_2(%arg0: i32, %arg1: i32) -> (i32, i32) {
    %c0_i32 = arith.constant 0 : i32
    %c0_i32_0 = arith.constant 0 : i32
    %c0_i32_1 = arith.constant 0 : i32
    return %c0_i32, %c0_i32_0 : i32, i32
  }
  func.func @transform_3(%arg0: i32, %arg1: i32) -> (i32, i32) {
    %c0_i32 = arith.constant 0 : i32
    %c0_i32_0 = arith.constant 0 : i32
    %c0_i32_1 = arith.constant 0 : i32
    return %c0_i32, %c0_i32_0 : i32, i32
  }
  func.func @transform_4(%arg0: i32, %arg1: i32) -> (i32, i32, i32) {
    %c0_i32 = arith.constant 0 : i32
    %c0_i32_0 = arith.constant 0 : i32
    %c0_i32_1 = arith.constant 0 : i32
    return %arg0, %c0_i32, %c0_i32_0 : i32, i32, i32
  }
}

</mosaic_0001>

<llo_original>
// kernel: downsampling_forward.1
$region0: #{downsampling_forward.1}
  #allocation0 [shape = 'u32[]', space=smem, size = 0x4, offset = 0x4, fixed_abs, tag = 'smem constant byte address 0x4 - core index']
  #allocation1 [shape = 'u32[144,128]{1,0:T(1,128)}', space=vmem, size = 0x12000, scoped, tag = 'internal scratch']
  #allocation2 [shape = 'f32[8,1]{1,0:T(8,128)}', space=vmem, size = 0x1000, scoped, tag = 'scratch operand']
  #allocation3 [shape = 'f32[8,1]{1,0:T(8,128)}', space=vmem, size = 0x1000, scoped, tag = 'scratch operand']
  %s0 = inlined_call_operand.vmem [shape: bf16[2,64,128], index: 0, kind: input, shape index: {}]
  %s1 = inlined_call_operand.vmem [shape: bf16[8,64], index: 1, kind: input, shape index: {}]
  %s2 = inlined_call_operand.vmem [shape: f32[8,1], index: 2, kind: input, shape index: {}]
  %s3 = inlined_call_operand.vmem [shape: f32[8,1], index: 3, kind: input, shape index: {}]
  %s4 = inlined_call_operand.vmem [shape: f32[2,8,128], index: 4, kind: output, shape index: {}]
  %s5 = sld [smem:[#allocation0]]
  $region57: #{downsampling_forward.1} parent=0
    _
  %s7 = ssub.s32 1, %s5
  %s8 = scalar_select 0, %s7, %s5
  loop: start=0, step=1, limit=4
  $region2: #{downsampling_forward.1} parent=0 // loop_pre_header
    _
  $region3: #{downsampling_forward.1} parent=0 // loop_header
    %s10 = sphi 0, %s14
    %p11 = scmp.ge.s32.totalorder %s10, 4
    %s17 = sphi 0, %s29
    %s18 = sphi 0, %s25
    %s19 = sphi 0, %s17
    %s20 = sphi 0, %s18
    %s21 = sphi 0, %s19
    %s22 = sphi 0, %s20
    %s34 = sphi 0, %s36
    %s37 = sphi 0, %s34
    %s38 = sphi 0, %s37
    %s54 = sphi 0, %s38
    %s58 = sphi 0, %s58
    %s60 = sphi 0, %s58
    %s61 = sphi 0, %s60
    %s75 = sphi 0, %s61
    %s79 = sphi 0, %s79
    %s81 = sphi 0, %s79
    %s82 = sphi 0, %s81
    %s96 = sphi 0, %s82
    %s100 = sphi 0, %s100
    %s102 = sphi 0, %s100
    %s103 = sphi 0, %s102
    %s117 = sphi 0, %s103
    %s123 = sphi 0, %s125
    %s126 = sphi 0, %s123
    %s127 = sphi 0, %s126
    %s143 = sphi 0, %s127
  $region4: #{downsampling_forward.1} parent=0 // loop_header_branch
    %13 = sbr.rel (%p11) target = $region8
  $region5: #{downsampling_forward.1} parent=0 // loop_body
    %s15 = ssub.s32 %s10, 1
    %s16 = ssub.s32 %s10, 2
    %s23 = sadd.s32 1, %s18
    %p24 = scmp.ge.s32.totalorder %s23, 1
    %s25 = scalar_select %p24, 0, %s23
    %s26 = sadd.s32 1, %s17
    %s27 = scalar_select %p24, %s26, %s17
    %p28 = scmp.ge.s32.totalorder %s27, 2
    %s29 = scalar_select %p28, 0, %s27
    %s30 = ssub.s32 %s17, %s29
    %s31 = ssub.s32 %s18, %s25
    %s32 = sor.u32 %s30, %s31
    %p33 = scmp.eq.s32.totalorder %s32, 0
    %s35 = sadd.s32 %s34, 1
    %s36 = scalar_select %p33, %s34, %s35
    %p39 = pneg %p33
    %p40 = scmp.eq.s32.totalorder %s10, 1
    %p41 = por %p39, %p40
    %p42 = scmp.ne.s32.totalorder %s34, %s37
    %p43 = scmp.eq.s32.totalorder %s10, 0
    %p44 = por %p42, %p43
    %p45 = scmp.ne.s32.totalorder %s34, %s37
    %p46 = scmp.eq.s32.totalorder %s15, 1
    %p47 = por %p45, %p46
    %p48 = scmp.ne.s32.totalorder %s37, %s38
    %p49 = scmp.eq.s32.totalorder %s15, 0
    %p50 = por %p48, %p49
    %p51 = scmp.ne.s32.totalorder %s37, %s38
    %p52 = scmp.eq.s32.totalorder %s16, 1
    %p53 = por %p51, %p52
    %p55 = scmp.ne.s32.totalorder %s38, %s54
    %p56 = scmp.eq.s32.totalorder %s16, 0
    %p57 = por %p55, %p56
    %s59 = sadd.s32 %s58, 1
    %p62 = scmp.eq.s32.totalorder %s10, 1
    %p63 = scmp.ne.s32.totalorder %s58, %s60
    %p64 = scmp.eq.s32.totalorder %s10, 0
    %p65 = por %p63, %p64
    %p66 = scmp.ne.s32.totalorder %s58, %s60
    %p67 = scmp.eq.s32.totalorder %s15, 1
    %p68 = por %p66, %p67
    %p69 = scmp.ne.s32.totalorder %s60, %s61
    %p70 = scmp.eq.s32.totalorder %s15, 0
    %p71 = por %p69, %p70
    %p72 = scmp.ne.s32.totalorder %s60, %s61
    %p73 = scmp.eq.s32.totalorder %s16, 1
    %p74 = por %p72, %p73
    %p76 = scmp.ne.s32.totalorder %s61, %s75
    %p77 = scmp.eq.s32.totalorder %s16, 0
    %p78 = por %p76, %p77
    %s80 = sadd.s32 %s79, 1
    %p83 = scmp.eq.s32.totalorder %s10, 1
    %p84 = scmp.ne.s32.totalorder %s79, %s81
    %p85 = scmp.eq.s32.totalorder %s10, 0
    %p86 = por %p84, %p85
    %p87 = scmp.ne.s32.totalorder %s79, %s81
    %p88 = scmp.eq.s32.totalorder %s15, 1
    %p89 = por %p87, %p88
    %p90 = scmp.ne.s32.totalorder %s81, %s82
    %p91 = scmp.eq.s32.totalorder %s15, 0
    %p92 = por %p90, %p91
    %p93 = scmp.ne.s32.totalorder %s81, %s82
    %p94 = scmp.eq.s32.totalorder %s16, 1
    %p95 = por %p93, %p94
    %p97 = scmp.ne.s32.totalorder %s82, %s96
    %p98 = scmp.eq.s32.totalorder %s16, 0
    %p99 = por %p97, %p98
    %s101 = sadd.s32 %s100, 1
    %p104 = scmp.eq.s32.totalorder %s10, 1
    %p105 = scmp.ne.s32.totalorder %s100, %s102
    %p106 = scmp.eq.s32.totalorder %s10, 0
    %p107 = por %p105, %p106
    %p108 = scmp.ne.s32.totalorder %s100, %s102
    %p109 = scmp.eq.s32.totalorder %s15, 1
    %p110 = por %p108, %p109
    %p111 = scmp.ne.s32.totalorder %s102, %s103
    %p112 = scmp.eq.s32.totalorder %s15, 0
    %p113 = por %p111, %p112
    %p114 = scmp.ne.s32.totalorder %s102, %s103
    %p115 = scmp.eq.s32.totalorder %s16, 1
    %p116 = por %p114, %p115
    %p118 = scmp.ne.s32.totalorder %s103, %s117
    %p119 = scmp.eq.s32.totalorder %s16, 0
    %p120 = por %p118, %p119
    %s121 = ssub.s32 %s17, %s29
    %p122 = scmp.eq.s32.totalorder %s121, 0
    %s124 = sadd.s32 %s123, 1
    %s125 = scalar_select %p122, %s123, %s124
    %p128 = pneg %p122
    %p129 = scmp.eq.s32.totalorder %s10, 1
    %p130 = por %p128, %p129
    %p131 = scmp.ne.s32.totalorder %s123, %s126
    %p132 = scmp.eq.s32.totalorder %s10, 0
    %p133 = por %p131, %p132
    %p134 = scmp.ne.s32.totalorder %s123, %s126
    %p135 = scmp.eq.s32.totalorder %s15, 1
    %p136 = por %p134, %p135
    %p137 = scmp.ne.s32.totalorder %s126, %s127
    %p138 = scmp.eq.s32.totalorder %s15, 0
    %p139 = por %p137, %p138
    %p140 = scmp.ne.s32.totalorder %s126, %s127
    %p141 = scmp.eq.s32.totalorder %s16, 1
    %p142 = por %p140, %p141
    %p144 = scmp.ne.s32.totalorder %s127, %s143
    %p145 = scmp.eq.s32.totalorder %s16, 0
    %p146 = por %p144, %p145
    %p147 = scmp.le.s32.totalorder 1, %s10
    %p148 = scmp.lt.s32.totalorder %s10, 3
    %p149 = pnand %p147, %p148
    %p150 = pneg %p149
    // Predicated region
    $region9: #{downsampling_forward.1} parent=5 // pred_check
      _
    $region10: #{downsampling_forward.1} parent=5 // pred_check_branch
      %152 = sbr.rel (%p149) target = $region12
    $region11: #{downsampling_forward.1} parent=5 // pred_region
      %s153 = ssub.s32 %s10, 1
      // Predicated region
      $region13: #{downsampling_forward.1} parent=11 // pred_check
        %p154 = pneg %p71
      $region14: #{downsampling_forward.1} parent=11 // pred_check_branch
        %156 = sbr.rel (%p154) target = $region16
      $region15: #{downsampling_forward.1} parent=11 // pred_region
        _
      $region16: #{downsampling_forward.1} parent=11 // pred_fallthru
        _
      // Predicated region
      $region17: #{downsampling_forward.1} parent=11 // pred_check
        %p157 = pneg %p92
      $region18: #{downsampling_forward.1} parent=11 // pred_check_branch
        %159 = sbr.rel (%p157) target = $region20
      $region19: #{downsampling_forward.1} parent=11 // pred_region
        _
      $region20: #{downsampling_forward.1} parent=11 // pred_fallthru
        _
      // Predicated region
      $region21: #{downsampling_forward.1} parent=11 // pred_check
        %p160 = pneg %p113
      $region22: #{downsampling_forward.1} parent=11 // pred_check_branch
        %162 = sbr.rel (%p160) target = $region24
      $region23: #{downsampling_forward.1} parent=11 // pred_region
        _
      $region24: #{downsampling_forward.1} parent=11 // pred_fallthru
        _
    $region12: #{downsampling_forward.1} parent=5 // pred_fallthru
      _
    %p163 = scmp.lt.s32.totalorder %s10, 2
    // Predicated region
    $region25: #{downsampling_forward.1} parent=5 // pred_check
      %p164 = pneg %p163
    $region26: #{downsampling_forward.1} parent=5 // pred_check_branch
      %166 = sbr.rel (%p164) target = $region28
    $region27: #{downsampling_forward.1} parent=5 // pred_region
      // Predicated region
      $region29: #{downsampling_forward.1} parent=27 // pred_check
        %p167 = pneg %p44
      $region30: #{downsampling_forward.1} parent=27 // pred_check_branch
        %169 = sbr.rel (%p167) target = $region32
      $region31: #{downsampling_forward.1} parent=27 // pred_region
        %p170 = scmp.lt.s32.totalorder %s17, 1
        %s171 = scalar_select %p170, %s17, 1
        %p172 = scmp.lt.s32.totalorder %s18, 0
        %s173 = scalar_select %p172, %s18, 0
        %s174 = smul.addr %s171, 8
        %s175 = sadd.s32 %s173, %s174
        %s176 = smul.addr %s175, 4
        %s177 = scalar_lea.vmem %s0, %s176
      $region32: #{downsampling_forward.1} parent=27 // pred_fallthru
        _
    $region28: #{downsampling_forward.1} parent=5 // pred_fallthru
      _
    %p178 = scmp.le.s32.totalorder 1, %s10
    %p179 = scmp.lt.s32.totalorder %s10, 3
    %p180 = pnand %p178, %p179
    %p181 = pneg %p180
    // Predicated region
    $region33: #{downsampling_forward.1} parent=5 // pred_check
      _
    $region34: #{downsampling_forward.1} parent=5 // pred_check_branch
      %183 = sbr.rel (%p180) target = $region36
    $region35: #{downsampling_forward.1} parent=5 // pred_region
      %s184 = ssub.s32 %s10, 1
      %p185 = scmp.lt.s32.totalorder %s19, 1
      %s186 = scalar_select %p185, %s19, 1
      %p187 = scmp.lt.s32.totalorder %s20, 0
      %s188 = scalar_select %p187, %s20, 0
      %s189 = smul.addr %s186, 8
      %s190 = sadd.s32 %s188, %s189
      %s191 = smul.addr %s190, 4
      %s192 = scalar_lea.vmem %s0, %s191
      %p193 = pneg %p50
      %p194 = pneg %p47
      %p195 = pneg %p71
      %p196 = pneg %p68
      %p197 = pneg %p92
      %p198 = pneg %p89
      %p199 = pneg %p113
      %p200 = pneg %p110
      %p201 = pneg %p139
      %p202 = pneg %p136
      %p203 = scmp.lt.s32.totalorder %s19, 1
      %s204 = scalar_select %p203, %s19, 1
      %s205 = smul.addr %s204, 8
      %s206 = scalar_lea.vmem %s4, %s205
      %p207 = scmp.lt.s32.totalorder %s19, 1
      %s208 = scalar_select %p207, %s19, 1
      %p209 = scmp.lt.s32.totalorder %s20, 0
      %s210 = scalar_select %p209, %s20, 0
      %s211 = smul.addr %s208, 8
      %s212 = sadd.s32 %s210, %s211
      %s213 = smul.addr %s212, 4
      %s214 = scalar_lea.vmem %s0, %s213
      %p215 = scmp.lt.s32.totalorder %s19, 1
      %s216 = scalar_select %p215, %s19, 1
      %s217 = smul.addr %s216, 8
      %s218 = scalar_lea.vmem %s4, %s217
      %p220 = scmp.eq.s32.totalorder %s20, 0
      // Predicated region
      $region37: #{downsampling_forward.1} parent=35 // pred_check
        %p221 = pneg %p220
      $region38: #{downsampling_forward.1} parent=35 // pred_check_branch
        %223 = sbr.rel (%p221) target = $region40
      $region39: #{downsampling_forward.1} parent=35 // pred_region
        %vm224 = vcmask 7168
        %225 = vst.msk [vmem:[#allocation2] sm:$0xff] %vm224, 0.0
        %226 = vst.msk [vmem:[#allocation3] sm:$0xff] %vm224, 0.0
      $region40: #{downsampling_forward.1} parent=35 // pred_fallthru
        _
      %v227 = vld [vmem:[%s1] sm:$0xf]
      %v228 = vld [vmem:[%s214] sm:$0xf]
      %v229 = vld [vmem:[%s214 + $0x4] sm:$0xf]
      %v230 = vld [vmem:[%s214 + $0x8] sm:$0xf]
      %v231 = vld [vmem:[%s214 + $0xc] sm:$0xf]
      %v232 = vld [vmem:[%s214 + $0x10] sm:$0xf]
      %v233 = vld [vmem:[%s214 + $0x14] sm:$0xf]
      %v234 = vld [vmem:[%s214 + $0x18] sm:$0xf]
      %v235 = vld [vmem:[%s214 + $0x1c] sm:$0xf]
      %v244 = vunpack.c.l.b16 %v228
      %v245 = vunpack.c.l.b16 %v229
      %v246 = vunpack.c.l.b16 %v230
      %v247 = vunpack.c.l.b16 %v231
      %v248 = vunpack.c.l.b16 %v232
      %v249 = vunpack.c.l.b16 %v233
      %v250 = vunpack.c.l.b16 %v234
      %v251 = vunpack.c.l.b16 %v235
      %v252 = vpack.c.b16 %v245, %v244
      %v253 = vpack.c.b16 %v247, %v246
      %v254 = vpack.c.b16 %v249, %v248
      %v255 = vpack.c.b16 %v251, %v250
      %vm260 = vcmask 523264
      %v262 = vsel %vm260, %v227, 0
      %264 = vmatprep.subr.bf16.mxu0 0
      %265 = vmatpush1.bf16.msra.mxu0 %v252
      %266 = vmatprep.subr.bf16.mxu0 0
      %267 = vmatpush1.bf16.msra.mxu0 %v253
      %268 = vmatprep.subr.bf16.mxu0 0
      %269 = vmatpush1.bf16.msra.mxu0 %v254
      %270 = vmatprep.subr.bf16.mxu0 0
      %271 = vmatpush1.bf16.msra.mxu0 %v255
      %272 = vmatprep.subr.bf16.mxu0 0
      %273 = vmatpush1.bf16.msra.mxu0 0
      %274 = vmatprep.subr.bf16.mxu0 0
      %275 = vmatpush1.bf16.msra.mxu0 0
      %276 = vmatprep.subr.bf16.mxu0 0
      %277 = vmatpush1.bf16.msra.mxu0 0
      %278 = vmatprep.subr.bf16.mxu0 0
      %279 = vmatpush1.bf16.msra.mxu0 0
      %280 = vmatprep.subr.bf16.mxu0 0
      %281 = vmatpush1.bf16.msra.mxu0 0
      %282 = vmatprep.subr.bf16.mxu0 0
      %283 = vmatpush1.bf16.msra.mxu0 0
      %284 = vmatprep.subr.bf16.mxu0 0
      %285 = vmatpush1.bf16.msra.mxu0 0
      %286 = vmatprep.subr.bf16.mxu0 0
      %287 = vmatpush1.bf16.msra.mxu0 0
      %288 = vmatprep.subr.bf16.mxu0 0
      %289 = vmatpush1.bf16.msra.mxu0 0
      %290 = vmatprep.subr.bf16.mxu0 0
      %291 = vmatpush1.bf16.msra.mxu0 0
      %292 = vmatprep.subr.bf16.mxu0 0
      %293 = vmatpush1.bf16.msra.mxu0 0
      %294 = vmatprep.subr.bf16.mxu0 0
      %295 = vmatpush1.bf16.msra.mxu0 0
      %296 = vmatprep.mubr.bf16.mxu0 0
      %297 = vmatmul.mubr.bf16.gmra.mrb[0].mxu0 %v262
      %v298 = vpop.f32.mrb[0].mxu0
      %v299 = vadd.f32 0.0, %v298
      %v300 = vpop.f32.mrb[0].mxu0
      %v301 = vpop.f32.mrb[0].mxu0
      %v302 = vpop.f32.mrb[0].mxu0
      %303 = vdwg.mxu0
      %v304 = vld [vmem:[#allocation2] sm:$0xff]
      %305 = vadd.xlane.f32.xlu0 %v299
      %v306 = vpop.xlane.xlu0 %305
      %v307 = vadd.f32 %v304, %v306
      %vm308 = vcmask 7168
      %309 = vst.msk [vmem:[#allocation2] sm:$0xff] %vm308, %v307
      %v310 = vld [vmem:[#allocation3] sm:$0xff]
      %v311 = vmul.f32 %v299, %v299
      %312 = vadd.xlane.f32.xlu0 %v311
      %v313 = vpop.xlane.xlu0 %312
      %v314 = vadd.f32 %v310, %v313
      %315 = vst.msk [vmem:[#allocation3] sm:$0xff] %vm308, %v314
      %s316 = smul.u32 %s20, 128
      %s317 = sshra.s32 %s316, 7
      %s318 = sand.u32 %s316, 127
      %s319 = scalar_lea.vmem %s218, %s317
      %320 = vst [vmem:[%s319] sm:$0xff] %v299
      // Predicated region
      $region41: #{downsampling_forward.1} parent=35 // pred_check
        %p321 = pneg %p220
      $region42: #{downsampling_forward.1} parent=35 // pred_check_branch
        %323 = sbr.rel (%p321) target = $region44
      $region43: #{downsampling_forward.1} parent=35 // pred_region
        %v324 = vld [vmem:[#allocation2] sm:$0xff]
        %v325 = vmul.f32 %v324, 0.015625
        %v326 = vld [vmem:[#allocation3] sm:$0xff]
        %v327 = vmul.f32 %v326, 0.015625
        %v328 = vmul.f32 %v325, %v325
        %v329 = vsub.f32 %v327, %v328
        %v330 = vmax.f32 %v329, 0.0
        %v331 = vld [vmem:[%s2] sm:$0xff]
        %v332 = vadd.f32 %v330, 1e-05
        %v333 = vrsqrt.pop %v332
        %v334 = vmul.f32 %v331, %v333
        %v335 = vld [vmem:[%s3] sm:$0xff]
        %v336 = vmul.f32 %v325, %v334
        %v337 = vsub.f32 %v335, %v336
        %v338 = vld [vmem:[%s218] sm:$0xff]
        %340 = vset.pattern.permute.xlu0 0
        %341 = vperm.xlu0 %340, %v334
        %v342 = vpop.permute.xlu0 %341
        %v344 = vmul.f32 %v338, %v342
        %346 = vset.pattern.permute.xlu0 0
        %347 = vperm.xlu0 %346, %v337
        %v348 = vpop.permute.xlu0 %347
        %v350 = vadd.f32 %v344, %v348
        %vm351 = vcmp.ge.f32.partialorder %v350, 0.0
        %v352 = vmul.f32 %v350, 0.2
        %v353 = vsel %vm351, %v350, %v352
        %354 = vst [vmem:[%s218] sm:$0xff] %v353
      $region44: #{downsampling_forward.1} parent=35 // pred_fallthru
        _
      %p355 = scmp.lt.s32.totalorder %s19, 1
      %s356 = scalar_select %p355, %s19, 1
      %s357 = smul.addr %s356, 8
      %s358 = scalar_lea.vmem %s4, %s357
      // Predicated region
      $region45: #{downsampling_forward.1} parent=35 // pred_check
        %p359 = pneg %p136
      $region46: #{downsampling_forward.1} parent=35 // pred_check_branch
        %361 = sbr.rel (%p359) target = $region48
      $region47: #{downsampling_forward.1} parent=35 // pred_region
        _
      $region48: #{downsampling_forward.1} parent=35 // pred_fallthru
        _
    $region36: #{downsampling_forward.1} parent=5 // pred_fallthru
      _
    %p362 = scmp.le.s32.totalorder 2, %s10
    // Predicated region
    $region49: #{downsampling_forward.1} parent=5 // pred_check
      %p363 = pneg %p362
    $region50: #{downsampling_forward.1} parent=5 // pred_check_branch
      %365 = sbr.rel (%p363) target = $region52
    $region51: #{downsampling_forward.1} parent=5 // pred_region
      %s366 = ssub.s32 %s10, 2
      // Predicated region
      $region53: #{downsampling_forward.1} parent=51 // pred_check
        %p367 = pneg %p142
      $region54: #{downsampling_forward.1} parent=51 // pred_check_branch
        %369 = sbr.rel (%p367) target = $region56
      $region55: #{downsampling_forward.1} parent=51 // pred_region
        %p370 = scmp.lt.s32.totalorder %s21, 1
        %s371 = scalar_select %p370, %s21, 1
        %s372 = smul.addr %s371, 8
        %s373 = scalar_lea.vmem %s4, %s372
      $region56: #{downsampling_forward.1} parent=51 // pred_fallthru
        _
    $region52: #{downsampling_forward.1} parent=5 // pred_fallthru
      _
  $region6: #{downsampling_forward.1} parent=0 // loop_footer
    %s14 = sadd.s32 1, %s10
  $region7: #{downsampling_forward.1} parent=0 // loop_footer_branch
    %9 = sbr.rel target = $region3
  $region8: #{downsampling_forward.1} parent=0 // loop_exit
    _

</llo_original>
